<compile_context>
chip_gen: v6e
topology: v6e:2x2x1
jax: 0.10.0
libtpu: 0.0.40
codegen_flags: <defaults>
</compile_context>

<pallas_src>
import numpy as np

import jax
import jax.numpy as jnp
from jax.experimental import pallas as pl
from jax.experimental.pallas import tpu as pltpu

LANE = 128


# ----------------------------------------------------------------------------
# Kernel
# ----------------------------------------------------------------------------
def pos_enc_kernel(x_ref, pe_ref, o_ref):
    # x_ref : (bt, lt) activation tile
    # pe_ref: (1,  lt) positional-encoding slice, broadcast over rows
    # One VALU add per vreg — fully hidden under the HBM DMA (memory-bound op),
    # so no further in-kernel micro-optimization is worthwhile.
    o_ref[...] = x_ref[...] + pe_ref[...]


# ----------------------------------------------------------------------------
# Tile selection
# ----------------------------------------------------------------------------
def _sublane_multiple(dtype):
    """Sublane alignment that keeps packed dtypes full-width (8 f32, 16 bf16, 32 int8)."""
    itemsize = jnp.dtype(dtype).itemsize
    return 8 * max(1, 4 // itemsize)


def _choose_tiles(B, Lp, itemsize, sub, *, target_bytes, vmem_budget):
    """Pick (batch_tile, lane_tile) near `target_bytes` per step, VMEM-aware."""
    # Lane tile: multiple of 128; take the whole (padded) row when it fits the
    # per-step byte target at the minimum sublane height.
    max_lane = max(LANE, ((target_bytes // (sub * itemsize)) // LANE) * LANE)
    lt = Lp if Lp <= max_lane else max_lane

    # Batch tile: fill ~target_bytes per step; sublane aligned or full extent.
    bt_want = max(1, target_bytes // (lt * itemsize))
    if bt_want >= B:
        bt = B
    else:
        bt = min(B, max(sub, (bt_want // sub) * sub))
        if bt >= B:
            bt = B

    # Keep double-buffered x-in + x-out + PE inside the scoped-VMEM budget
    # (matters most on v7x where physical VMEM is 64 MiB).
    def footprint(bt_, lt_):
        return 4 * bt_ * lt_ * itemsize + 2 * lt_ * itemsize

    while footprint(bt, lt) > vmem_budget and bt > sub:
        bt = max(sub, ((bt // 2) // sub) * sub)
    while footprint(bt, lt) > vmem_budget and lt > LANE:
        lt = max(LANE, ((lt // 2) // LANE) * LANE)

    # Guarantee >=2 grid steps for non-trivial inputs so "parallel" semantics
    # can shard across both v7x TensorCores (neutral on single-TC v5e/v6e).
    nb = -(-B // bt)
    nl = -(-Lp // lt)
    if nb * nl == 1 and B * Lp * itemsize > (2 << 20):
        if lt >= 2 * LANE:
            lt = max(LANE, ((lt // 2) // LANE) * LANE)
        elif bt >= 2 * sub:
            bt = max(sub, ((bt // 2) // sub) * sub)

    return bt, lt


# ----------------------------------------------------------------------------
# Wrapper
# ----------------------------------------------------------------------------
def positional_encoding(x, pe_table, *, target_bytes=4 << 20):
    """x: (B, S, D). pe_table: (max_len, D) sinusoidal table. Returns x + pe[:S]."""
    B, S, D = x.shape
    L = S * D
    itemsize = jnp.dtype(x.dtype).itemsize
    sub = _sublane_multiple(x.dtype)

    # Generation-aware VMEM budget (v5e/v6e: 128 MiB physical, v7x: 64 MiB).
    try:
        vmem_phys = int(pltpu.get_tpu_info().vmem_capacity_bytes)
    except Exception:  # pragma: no cover - conservative fallback (v7x-sized)
        vmem_phys = 64 << 20
    vmem_budget = min(vmem_phys // 2, 48 << 20)

    # Lane-dense 2-D views.  Pad the flattened lane axis to a multiple of 128 if
    # needed so stores stay unmasked for arbitrary (S, D), then slice back.
    Lp = ((L + LANE - 1) // LANE) * LANE
    x2 = x.reshape(B, L)
    pe_slab = pe_table[:S].reshape(1, L).astype(x.dtype)
    if Lp != L:
        x2 = jnp.pad(x2, ((0, 0), (0, Lp - L)))
        pe_slab = jnp.pad(pe_slab, ((0, 0), (0, Lp - L)))

    bt, lt = _choose_tiles(B, Lp, itemsize, sub,
                           target_bytes=target_bytes, vmem_budget=vmem_budget)
    nb = -(-B // bt)   # cdiv: ragged last batch block is fine
    nl = -(-Lp // lt)  # cdiv: ragged last lane block is fine (lt % 128 == 0)

    # PE block index is constant across the grid only when there is a single
    # lane tile; single-buffer it then (saves a VMEM buffer).  Otherwise keep
    # the default double buffering so the next PE slice prefetches under compute.
    if nl == 1:
        pe_spec = pl.BlockSpec((1, lt), lambda i, j: (0, j),
                               pipeline_mode=pl.Buffered(1))
        n_pe_buf = 1
    else:
        pe_spec = pl.BlockSpec((1, lt), lambda i, j: (0, j))
        n_pe_buf = 2

    # Explicit scoped-VMEM limit sized from the actual per-step footprint.
    footprint = 4 * bt * lt * itemsize + n_pe_buf * lt * itemsize
    vmem_limit = int(min(vmem_budget, max(16 << 20, footprint + (4 << 20))))

    out2 = pl.pallas_call(
        pos_enc_kernel,
        out_shape=jax.ShapeDtypeStruct((B, Lp), x.dtype),
        grid_spec=pltpu.PrefetchScalarGridSpec(
            num_scalar_prefetch=0,
            grid=(nb, nl),
            in_specs=[
                pl.BlockSpec((bt, lt), lambda i, j: (i, j)),  # activations
                pe_spec,                                      # PE slab slice
            ],
            out_specs=pl.BlockSpec((bt, lt), lambda i, j: (i, j)),
        ),
        compiler_params=pltpu.CompilerParams(
            dimension_semantics=("parallel", "parallel"),
            vmem_limit_bytes=vmem_limit,
        ),
    )(x2, pe_slab)

    if Lp != L:
        out2 = out2[:, :L]
    return out2.reshape(B, S, D)


# ----------------------------------------------------------------------------
# PE table construction (matches the PyTorch buffer exactly)
# ----------------------------------------------------------------------------
def build_pe_table(max_len, d_model, dtype=jnp.float32):
    position = jnp.arange(max_len, dtype=jnp.float32)[:, None]            # (L, 1)
    div_term = jnp.exp(
        jnp.arange(0, d_model, 2, dtype=jnp.float32) * (-np.log(10000.0) / d_model)
    )                                                                     # (D/2,)
    ang = position * div_term                                             # (L, D/2)
    pe = jnp.zeros((max_len, d_model), jnp.float32)
    pe = pe.at[:, 0::2].set(jnp.sin(ang))
    pe = pe.at[:, 1::2].set(jnp.cos(ang))
    return pe.astype(dtype)


def positional_encoding_ref(x, pe_table):
    S = x.shape[1]
    return x + pe_table[None, :S, :].astype(x.dtype)


# ----------------------------------------------------------------------------
# Test
# ----------------------------------------------------------------------------
if __name__ == "__main__":
    B, S, d_model = 2, 8, 32
    max_len = 5000

    key = jax.random.PRNGKey(0)
    x = jax.random.normal(key, (B, S, d_model), jnp.float32)
    pe_table = build_pe_table(max_len, d_model)

    out = positional_encoding(x, pe_table)
    out = jax.block_until_ready(out)

    ref = positional_encoding_ref(x, pe_table)
    assert out.shape == (B, S, d_model)
    assert jnp.allclose(out, ref, atol=1e-6, rtol=1e-6), (
        float(jnp.max(jnp.abs(out - ref)))
    )
    print("KERNEL_OK")
</pallas_src>

<mosaic_0001>
module attributes {stable_mosaic.version = 11 : i64} {
  func.func @pos_enc_kernel(%arg0: i32, %arg1: i32, %arg2: memref<2x256xf32, #tpu.memory_space<vmem>>, %arg3: memref<1x256xf32, #tpu.memory_space<vmem>>, %arg4: memref<2x256xf32, #tpu.memory_space<vmem>>) attributes {dimension_semantics = [#tpu.dimension_semantics<parallel>, #tpu.dimension_semantics<parallel>], iteration_bounds = array<i64: 1, 1>, scalar_prefetch = 0 : i64, scratch_operands = 0 : i64, tpu.core_type = #tpu.core_type<tc>, window_params = [{transform_indices = @transform_0, window_bounds = array<i64: 2, 256>}, {pipeline_mode = #tpu.pipeline_mode<synchronous>, transform_indices = @transform_1, window_bounds = array<i64: 1, 256>}, {transform_indices = @transform_2, window_bounds = array<i64: 2, 256>}]} {
    %c0 = arith.constant 0 : index
    %c0_0 = arith.constant 0 : index
    %0 = vector.load %arg2[%c0, %c0_0] : memref<2x256xf32, #tpu.memory_space<vmem>>, vector<2x256xf32>
    %c0_1 = arith.constant 0 : index
    %c0_2 = arith.constant 0 : index
    %1 = vector.load %arg3[%c0_1, %c0_2] : memref<1x256xf32, #tpu.memory_space<vmem>>, vector<1x256xf32>
    %2 = vector.broadcast %1 : vector<1x256xf32> to vector<2x256xf32>
    %3 = arith.addf %0, %2 : vector<2x256xf32>
    %c0_3 = arith.constant 0 : index
    %c0_4 = arith.constant 0 : index
    %4 = vector.load %arg4[%c0_3, %c0_4] : memref<2x256xf32, #tpu.memory_space<vmem>>, vector<2x256xf32>
    tpu.vector_store %arg4[%c0_3, %c0_4], %3 {strides = array<i32>} : memref<2x256xf32, #tpu.memory_space<vmem>>, vector<2x256xf32>,
    return
  }
  func.func @transform_0(%arg0: i32, %arg1: i32) -> (i32, i32) {
    %c0_i32 = arith.constant 0 : i32
    return %arg0, %arg1 : i32, i32
  }
  func.func @transform_1(%arg0: i32, %arg1: i32) -> (i32, i32) {
    %c0_i32 = arith.constant 0 : i32
    %c0_i32_0 = arith.constant 0 : i32
    return %c0_i32, %arg1 : i32, i32
  }
  func.func @transform_2(%arg0: i32, %arg1: i32) -> (i32, i32) {
    %c0_i32 = arith.constant 0 : i32
    return %arg0, %arg1 : i32, i32
  }
}

</mosaic_0001>

<llo_original>
// kernel: tpu_custom_call.1
$region0: #{tpu_custom_call.1}
  #allocation0 [shape = 'u32[]', space=smem, size = 0x4, offset = 0x4, fixed_abs, tag = 'smem constant byte address 0x4 - core index']
  #allocation1 [shape = 'u32[144,128]{1,0:T(1,128)}', space=vmem, size = 0x12000, scoped, tag = 'internal scratch']
  %s0 = inlined_call_operand.hbm [shape: f32[2,256], index: 0, kind: input, shape index: {}]
  %s1 = inlined_call_operand.hbm [shape: f32[1,256], index: 1, kind: input, shape index: {}]
  %s2 = inlined_call_operand.hbm [shape: f32[2,256], index: 2, kind: output, shape index: {}]
  %s3 = sld [smem:[#allocation0]]
  $region26: #{tpu_custom_call.1} parent=0
    _
  %s5 = ssub.s32 1, %s3
  %s6 = scalar_select 0, %s5, %s3
  $region1: #{tpu_custom_call.1} parent=0
    #allocation2 [shape = 'u8[2048]{0}', space=vmem, size = 0x800, scoped, tag = 'input window, operand 0, single buffered']
    #allocation3 [shape = 's32[1]{0}', space=sflag, size = 0x4, scoped, tag = 'scoped memory for tpu_custom_call.1']
    #allocation4 [shape = 's32[1]{0}', space=sflag, size = 0x4, scoped, tag = 'scoped memory for tpu_custom_call.1']
    #allocation5 [shape = 'u8[1024]{0}', space=vmem, size = 0x400, scoped, tag = 'input window, operand 1, single buffered']
    #allocation6 [shape = 's32[1]{0}', space=sflag, size = 0x4, scoped, tag = 'scoped memory for tpu_custom_call.1']
    #allocation7 [shape = 'u8[2048]{0}', space=vmem, size = 0x800, scoped, tag = 'output window, operand 0, single buffered']
    %7 = vsyncpa [#allocation3], 0
    %8 = vsyncpa [#allocation6], 0
    %9 = vsyncpa [#allocation4], 0
    // Predicated region
    $region2: #{tpu_custom_call.1} parent=1 // pred_check
      _
    $region3: #{tpu_custom_call.1} parent=1 // pred_check_branch
      %11 = sbr.rel (0) target = $region5
    $region4: #{tpu_custom_call.1} parent=1 // pred_region
      %s13 = ssub.s32 64, 64
      %14 = vsyncadd [#allocation3], %s13
      %s16 = sshll.u32 [#allocation2], 4
      %s17 = int_to_ptr.vmem [resolvable:$true] %s16
      %19 = dma.hbm_to_vmem [thread:$0]  %s0, 64, %s17, [#allocation3]
    $region5: #{tpu_custom_call.1} parent=1 // pred_fallthru
      _
    // Predicated region
    $region6: #{tpu_custom_call.1} parent=1 // pred_check
      _
    $region7: #{tpu_custom_call.1} parent=1 // pred_check_branch
      %21 = sbr.rel (0) target = $region9
    $region8: #{tpu_custom_call.1} parent=1 // pred_region
      %s23 = ssub.s32 32, 32
      %24 = vsyncadd [#allocation6], %s23
      %s26 = sshll.u32 [#allocation5], 4
      %s27 = int_to_ptr.vmem [resolvable:$true] %s26
      %29 = dma.hbm_to_vmem [thread:$0]  %s1, 32, %s27, [#allocation6]
    $region9: #{tpu_custom_call.1} parent=1 // pred_fallthru
      _
    // Predicated region
    $region10: #{tpu_custom_call.1} parent=1 // pred_check
      _
    $region11: #{tpu_custom_call.1} parent=1 // pred_check_branch
      %31 = sbr.rel (0) target = $region13
    $region12: #{tpu_custom_call.1} parent=1 // pred_region
      %32 = dma.done [#allocation3], 64
    $region13: #{tpu_custom_call.1} parent=1 // pred_fallthru
      _
    // Predicated region
    $region14: #{tpu_custom_call.1} parent=1 // pred_check
      _
    $region15: #{tpu_custom_call.1} parent=1 // pred_check_branch
      %34 = sbr.rel (0) target = $region17
    $region16: #{tpu_custom_call.1} parent=1 // pred_region
      %35 = dma.done [#allocation6], 32
    $region17: #{tpu_custom_call.1} parent=1 // pred_fallthru
      _
    %v36 = vld [vmem:[#allocation2] sm:$0xf]
    %v37 = vld [vmem:[#allocation5] sm:$0x3]
    %v39 = vlaneseq
    %v40 = vshrl.u32 %v39, 7
    %v41 = vsub.s32 0, %v40
    %v42 = vrot.slane %v37, %v41
    %v43 = vlaneseq
    %v44 = vshrl.u32 %v43, 7
    %v45 = vsub.s32 1, %v44
    %v46 = vrot.slane %v37, %v45
    %v47 = vcombine.low %v42, %v46
    %v49 = vunpack.c.l.s4 1983009808
    %v50 = vunpack.c.0.s8 %v49
    %v51 = vlaneseq
    %v52 = vshrl.u32 %v51, 7
    %v53 = vsub.s32 %v50, %v52
    %v54 = vrot.slane %v47, %v53
    %v56 = vadd.f32 %v36, %v54
    %57 = vst [vmem:[#allocation7] sm:$0xf] %v56
    // Predicated region
    $region18: #{tpu_custom_call.1} parent=1 // pred_check
      _
    $region19: #{tpu_custom_call.1} parent=1 // pred_check_branch
      %59 = sbr.rel (0) target = $region21
    $region20: #{tpu_custom_call.1} parent=1 // pred_region
      %s61 = ssub.s32 64, 64
      %62 = vsyncadd [#allocation4], %s61
      %s64 = sshll.u32 [#allocation7], 4
      %s65 = int_to_ptr.vmem [resolvable:$true] %s64
      %67 = dma.vmem_to_hbm [thread:$0]  %s65, 64, %s2, [#allocation4]
    $region21: #{tpu_custom_call.1} parent=1 // pred_fallthru
      _
    // Predicated region
    $region22: #{tpu_custom_call.1} parent=1 // pred_check
      _
    $region23: #{tpu_custom_call.1} parent=1 // pred_check_branch
      %69 = sbr.rel (0) target = $region25
    $region24: #{tpu_custom_call.1} parent=1 // pred_region
      %70 = dma.done [#allocation4], 64
    $region25: #{tpu_custom_call.1} parent=1 // pred_fallthru
      _
    %71 = vsyncpa [#allocation3], 1
    %72 = vsyncpa [#allocation6], 1
    %73 = vsyncpa [#allocation4], 1

</llo_original>
